<compile_context>
chip_gen: v6e
topology: v6e:2x2x1
jax: 0.10.0
libtpu: 0.0.40
codegen_flags: <defaults>
</compile_context>

<pallas_src>
import inspect

import jax
import jax.numpy as jnp
from jax.experimental import pallas as pl
from jax.experimental.pallas import tpu as pltpu

EPS = 1e-5  # torch.nn.LayerNorm default
MIB = 1024 * 1024


def _round_up(n, m):
    return ((n + m - 1) // m) * m


def _vmem_capacity_bytes():
    """Physical per-core VMEM; conservative default if the query fails."""
    try:
        cap = getattr(pltpu.get_tpu_info(), "vmem_capacity_bytes", None)
        if cap:
            return int(cap)
    except Exception:  # hardware query only -- never masks a compile error
        pass
    return 64 * MIB  # safe on every generation (v7x has 64 MiB per core)


def _pipeline_mode_supported():
    """Explicit feature check for BlockSpec(..., pipeline_mode=pl.Buffered(n))."""
    if not hasattr(pl, "Buffered"):
        return False
    try:
        return "pipeline_mode" in inspect.signature(pl.BlockSpec).parameters
    except (TypeError, ValueError):
        return False


def _make_kernel(c, c_pad):
    """Kernel body, closing over the true (c) / padded (c_pad) channel widths."""
    inv_c = 1.0 / float(c)
    n_pad = float(c_pad - c)

    def layernorm(h, gamma, beta):
        # Padded columns of h are exactly zero (zero-padded weight columns and
        # biases), so the full padded-row sum equals the true-C sum.  On padded
        # columns d == -mu, so the variance needs only a scalar correction.
        mu = jnp.sum(h, axis=-1, keepdims=True) * inv_c
        d = h - mu
        ssq = jnp.sum(d * d, axis=-1, keepdims=True)
        if n_pad:
            ssq = ssq - n_pad * (mu * mu)
        var = jnp.maximum(ssq * inv_c, 0.0)  # guard tiny negative rounding
        return d * jax.lax.rsqrt(var + EPS) * gamma + beta

    def kernel(x_ref, w1_ref, w2_ref, vec_ref, o_ref):
        vecs = vec_ref[...]                       # (8, C_pad) f32
        b1, g1, be1 = vecs[0:1], vecs[1:2], vecs[2:3]
        b2, g2, be2 = vecs[3:4], vecs[4:5], vecs[5:6]

        # Linear1: bf16 MXU matmul with (K, N) weights, f32 accumulation.
        h = jnp.dot(x_ref[...].astype(jnp.bfloat16), w1_ref[...],
                    preferred_element_type=jnp.float32) + b1
        h = layernorm(h, g1, be1)
        h = jnp.maximum(h, 0.0)

        # Linear2
        h = jnp.dot(h.astype(jnp.bfloat16), w2_ref[...],
                    preferred_element_type=jnp.float32) + b2
        h = layernorm(h, g2, be2)

        # Residual: re-read x from the pipelined input buffer (no live copy).
        o_ref[...] = (x_ref[...] + h).astype(o_ref.dtype)

    return kernel


def bro_block(x, params, *, tb_target=1024):
    """x: (B, C) float32; params: torch-layout weights (see make_params)."""
    B, C = x.shape
    C_pad = max(128, _round_up(C, 128))

    pipe_ok = _pipeline_mode_supported()

    # --- generation-aware VMEM budget -> batch tile size ----------------------
    vmem_cap = _vmem_capacity_bytes()             # 128 MiB v5e/v6e, 64 MiB v7x
    budget = max(32 * MIB, vmem_cap - 24 * MIB)

    w_bufs = 1 if pipe_ok else 2                  # Buffered(1) resident weights
    w_bytes = 2 * C_pad * C_pad * 2 * w_bufs      # two bf16 (C_pad, C_pad) mats
    vec_bytes = 8 * C_pad * 4 * w_bufs            # packed (8, C_pad) f32 block
    per_row = 40 * C_pad                          # x/out tiles (2 bufs, f32)
                                                  # + f32/bf16 intermediates

    min_needed = w_bytes + vec_bytes + per_row * 8
    if min_needed > budget:
        # TODO(synk): large-C path -- keep weights in HBM (memory_space=pl.ANY)
        # and stream (C_pad, tn) column slabs via pltpu.emit_pipeline instead of
        # requesting both full matrices resident in VMEM.
        raise ValueError(
            f"channels={C}: resident weights need {min_needed} B VMEM "
            f"> budget {budget} B; weight-streaming path not implemented")

    tb_fit = (budget - w_bytes - vec_bytes) // per_row
    tb = int(min(tb_target, tb_fit, _round_up(B, 8)))
    tb = max(8, (tb // 8) * 8)
    # v7x megacore: make sure the "parallel" grid axis has >= 2 steps.
    if B > 8 and _round_up(B, tb) // tb < 2:
        tb = max(8, ((_round_up(B, 8) // 2) // 8) * 8)
    B_pad = _round_up(B, tb)

    # --- zero-pad to lane/sublane friendly shapes -----------------------------
    x_p = jnp.zeros((B_pad, C_pad), x.dtype).at[:B, :C].set(x)

    def pad_mat(w):  # torch (out, in) f32 -> (in, out) = (K, N), padded, bf16
        return (jnp.zeros((C_pad, C_pad), jnp.float32)
                .at[:C, :C].set(w.T).astype(jnp.bfloat16))

    vecs = jnp.zeros((8, C_pad), jnp.float32)
    for i, name in enumerate(("b1", "g1", "be1", "b2", "g2", "be2")):
        vecs = vecs.at[i, :C].set(params[name].reshape(-1))

    operands = (x_p, pad_mat(params["w1"]), pad_mat(params["w2"]), vecs)

    kernel = _make_kernel(C, C_pad)
    grid = (B_pad // tb,)

    def const_spec(shape):
        if pipe_ok:  # constant-index blocks only need a single VMEM buffer
            return pl.BlockSpec(shape, lambda i: (0, 0),
                                pipeline_mode=pl.Buffered(1))
        return pl.BlockSpec(shape, lambda i: (0, 0))

    in_specs = [pl.BlockSpec((tb, C_pad), lambda i: (i, 0)),
                const_spec((C_pad, C_pad)),
                const_spec((C_pad, C_pad)),
                const_spec((8, C_pad))]
    out_spec = pl.BlockSpec((tb, C_pad), lambda i: (i, 0))

    cost = pl.CostEstimate(
        flops=4 * B_pad * C_pad * C_pad,                 # two matmuls
        transcendentals=2 * B_pad,                       # rsqrt per row per LN
        bytes_accessed=(2 * B_pad * C_pad * 4            # x in + out (f32)
                        + 2 * C_pad * C_pad * 2          # bf16 weights
                        + 8 * C_pad * 4))                # packed vectors
    vmem_limit = int(min(vmem_cap,
                         max(16 * MIB,
                             w_bytes + vec_bytes + per_row * tb + 4 * MIB)))

    out_p = pl.pallas_call(
        kernel,
        out_shape=jax.ShapeDtypeStruct((B_pad, C_pad), x.dtype),
        grid_spec=pltpu.PrefetchScalarGridSpec(
            num_scalar_prefetch=0,
            grid=grid,
            in_specs=in_specs,
            out_specs=out_spec),
        compiler_params=pltpu.CompilerParams(
            dimension_semantics=("parallel",),
            vmem_limit_bytes=vmem_limit),
        cost_estimate=cost,
    )(*operands)

    return out_p[:B, :C]


def bro_block_ref(x, p):
    """Pure-JAX f32 reference mirroring the PyTorch module."""
    def ln(h, g, b):
        mu = jnp.mean(h, axis=-1, keepdims=True)
        var = jnp.mean((h - mu) ** 2, axis=-1, keepdims=True)
        return (h - mu) * jax.lax.rsqrt(var + EPS) * g + b

    h = x @ p["w1"].T + p["b1"]
    h = ln(h, p["g1"], p["be1"])
    h = jnp.maximum(h, 0.0)
    h = h @ p["w2"].T + p["b2"]
    h = ln(h, p["g2"], p["be2"])
    return x + h


def make_params(key, channels):
    k1, k2, k3, k4 = jax.random.split(key, 4)
    scale = 1.0 / jnp.sqrt(channels)
    return {
        "w1": jax.random.uniform(k1, (channels, channels), jnp.float32,
                                 -scale, scale),
        "b1": jax.random.uniform(k2, (1, channels), jnp.float32, -scale, scale),
        "g1": jnp.ones((1, channels), jnp.float32),
        "be1": jnp.zeros((1, channels), jnp.float32),
        "w2": jax.random.uniform(k3, (channels, channels), jnp.float32,
                                 -scale, scale),
        "b2": jax.random.uniform(k4, (1, channels), jnp.float32, -scale, scale),
        "g2": jnp.ones((1, channels), jnp.float32),
        "be2": jnp.zeros((1, channels), jnp.float32),
    }


if __name__ == "__main__":
    B, C = 16, 32
    key = jax.random.PRNGKey(0)
    kx, kp = jax.random.split(key)
    x = jax.random.normal(kx, (B, C), jnp.float32)
    params = make_params(kp, C)

    out = bro_block(x, params)
    out = jax.block_until_ready(out)

    ref = bro_block_ref(x, params)
    assert out.shape == (B, C)
    # bf16 matmul inputs with f32 accumulation -> loosened tolerance vs f32 ref.
    assert jnp.allclose(out, ref, atol=3e-2, rtol=3e-2), (
        f"max abs err {jnp.max(jnp.abs(out - ref))}")
    print("KERNEL_OK")
</pallas_src>

<mosaic_0001>
module attributes {stable_mosaic.version = 11 : i64} {
  func.func @kernel(%arg0: i32, %arg1: memref<8x128xf32, #tpu.memory_space<vmem>>, %arg2: memref<128x128xbf16, #tpu.memory_space<vmem>>, %arg3: memref<128x128xbf16, #tpu.memory_space<vmem>>, %arg4: memref<8x128xf32, #tpu.memory_space<vmem>>, %arg5: memref<8x128xf32, #tpu.memory_space<vmem>>) attributes {dimension_semantics = [#tpu.dimension_semantics<parallel>], iteration_bounds = array<i64: 2>, scalar_prefetch = 0 : i64, scratch_operands = 0 : i64, tpu.core_type = #tpu.core_type<tc>, window_params = [{transform_indices = @transform_0, window_bounds = array<i64: 8, 128>}, {pipeline_mode = #tpu.pipeline_mode<synchronous>, transform_indices = @transform_1, window_bounds = array<i64: 128, 128>}, {pipeline_mode = #tpu.pipeline_mode<synchronous>, transform_indices = @transform_2, window_bounds = array<i64: 128, 128>}, {pipeline_mode = #tpu.pipeline_mode<synchronous>, transform_indices = @transform_3, window_bounds = array<i64: 8, 128>}, {transform_indices = @transform_4, window_bounds = array<i64: 8, 128>}]} {
    %c0 = arith.constant 0 : index
    %c0_0 = arith.constant 0 : index
    %0 = vector.load %arg4[%c0, %c0_0] : memref<8x128xf32, #tpu.memory_space<vmem>>, vector<8x128xf32>
    %1 = vector.extract_strided_slice %0 {offsets = [0, 0], sizes = [1, 128], strides = [1, 1]} : vector<8x128xf32> to vector<1x128xf32>
    %2 = vector.extract_strided_slice %0 {offsets = [1, 0], sizes = [1, 128], strides = [1, 1]} : vector<8x128xf32> to vector<1x128xf32>
    %3 = vector.extract_strided_slice %0 {offsets = [2, 0], sizes = [1, 128], strides = [1, 1]} : vector<8x128xf32> to vector<1x128xf32>
    %4 = vector.extract_strided_slice %0 {offsets = [3, 0], sizes = [1, 128], strides = [1, 1]} : vector<8x128xf32> to vector<1x128xf32>
    %5 = vector.extract_strided_slice %0 {offsets = [4, 0], sizes = [1, 128], strides = [1, 1]} : vector<8x128xf32> to vector<1x128xf32>
    %6 = vector.extract_strided_slice %0 {offsets = [5, 0], sizes = [1, 128], strides = [1, 1]} : vector<8x128xf32> to vector<1x128xf32>
    %c0_1 = arith.constant 0 : index
    %c0_2 = arith.constant 0 : index
    %7 = vector.load %arg1[%c0_1, %c0_2] : memref<8x128xf32, #tpu.memory_space<vmem>>, vector<8x128xf32>
    %8 = arith.truncf %7 : vector<8x128xf32> to vector<8x128xbf16>
    %c0_3 = arith.constant 0 : index
    %c0_4 = arith.constant 0 : index
    %9 = vector.load %arg2[%c0_3, %c0_4] : memref<128x128xbf16, #tpu.memory_space<vmem>>, vector<128x128xbf16>
    %cst = arith.constant dense<0.000000e+00> : vector<8x128xf32>
    %10 = tpu.matmul %8, %9, %cst {dimension_numbers = #tpu.dot_dimension_numbers<[1], [0], [0], [1], [0, 0, 1, 1], [], []>} : vector<8x128xbf16>, vector<128x128xbf16>, vector<8x128xf32> -> vector<8x128xf32>
    %11 = vector.broadcast %1 : vector<1x128xf32> to vector<8x128xf32>
    %12 = arith.addf %10, %11 : vector<8x128xf32>
    %cst_5 = arith.constant dense<0.000000e+00> : vector<8xf32>
    %13 = vector.multi_reduction <add>, %12, %cst_5 [1] : vector<8x128xf32> to vector<8xf32>
    %14 = vector.shape_cast %13 : vector<8xf32> to vector<8x1xf32>
    %cst_6 = arith.constant 3.125000e-02 : f32
    %15 = vector.broadcast %cst_6 : f32 to vector<8x1xf32>
    %16 = arith.mulf %14, %15 : vector<8x1xf32>
    %17 = vector.broadcast %16 : vector<8x1xf32> to vector<8x128xf32>
    %18 = arith.subf %12, %17 : vector<8x128xf32>
    %19 = arith.mulf %18, %18 : vector<8x128xf32>
    %cst_7 = arith.constant dense<0.000000e+00> : vector<8xf32>
    %20 = vector.multi_reduction <add>, %19, %cst_7 [1] : vector<8x128xf32> to vector<8xf32>
    %21 = vector.shape_cast %20 : vector<8xf32> to vector<8x1xf32>
    %22 = arith.mulf %16, %16 : vector<8x1xf32>
    %cst_8 = arith.constant 9.600000e+01 : f32
    %23 = vector.broadcast %cst_8 : f32 to vector<8x1xf32>
    %24 = arith.mulf %23, %22 : vector<8x1xf32>
    %25 = arith.subf %21, %24 : vector<8x1xf32>
    %cst_9 = arith.constant 3.125000e-02 : f32
    %26 = vector.broadcast %cst_9 : f32 to vector<8x1xf32>
    %27 = arith.mulf %25, %26 : vector<8x1xf32>
    %cst_10 = arith.constant 0.000000e+00 : f32
    %28 = vector.broadcast %cst_10 : f32 to vector<8x1xf32>
    %29 = arith.maximumf %27, %28 : vector<8x1xf32>
    %cst_11 = arith.constant 9.99999974E-6 : f32
    %30 = vector.broadcast %cst_11 : f32 to vector<8x1xf32>
    %31 = arith.addf %29, %30 : vector<8x1xf32>
    %32 = math.rsqrt %31 : vector<8x1xf32>
    %33 = vector.broadcast %32 : vector<8x1xf32> to vector<8x128xf32>
    %34 = arith.mulf %18, %33 : vector<8x128xf32>
    %35 = vector.broadcast %2 : vector<1x128xf32> to vector<8x128xf32>
    %36 = arith.mulf %34, %35 : vector<8x128xf32>
    %37 = vector.broadcast %3 : vector<1x128xf32> to vector<8x128xf32>
    %38 = arith.addf %36, %37 : vector<8x128xf32>
    %cst_12 = arith.constant 0.000000e+00 : f32
    %39 = vector.broadcast %cst_12 : f32 to vector<8x128xf32>
    %40 = arith.maximumf %38, %39 : vector<8x128xf32>
    %41 = arith.truncf %40 : vector<8x128xf32> to vector<8x128xbf16>
    %c0_13 = arith.constant 0 : index
    %c0_14 = arith.constant 0 : index
    %42 = vector.load %arg3[%c0_13, %c0_14] : memref<128x128xbf16, #tpu.memory_space<vmem>>, vector<128x128xbf16>
    %cst_15 = arith.constant dense<0.000000e+00> : vector<8x128xf32>
    %43 = tpu.matmul %41, %42, %cst_15 {dimension_numbers = #tpu.dot_dimension_numbers<[1], [0], [0], [1], [0, 0, 1, 1], [], []>} : vector<8x128xbf16>, vector<128x128xbf16>, vector<8x128xf32> -> vector<8x128xf32>
    %44 = vector.broadcast %4 : vector<1x128xf32> to vector<8x128xf32>
    %45 = arith.addf %43, %44 : vector<8x128xf32>
    %cst_16 = arith.constant dense<0.000000e+00> : vector<8xf32>
    %46 = vector.multi_reduction <add>, %45, %cst_16 [1] : vector<8x128xf32> to vector<8xf32>
    %47 = vector.shape_cast %46 : vector<8xf32> to vector<8x1xf32>
    %cst_17 = arith.constant 3.125000e-02 : f32
    %48 = vector.broadcast %cst_17 : f32 to vector<8x1xf32>
    %49 = arith.mulf %47, %48 : vector<8x1xf32>
    %50 = vector.broadcast %49 : vector<8x1xf32> to vector<8x128xf32>
    %51 = arith.subf %45, %50 : vector<8x128xf32>
    %52 = arith.mulf %51, %51 : vector<8x128xf32>
    %cst_18 = arith.constant dense<0.000000e+00> : vector<8xf32>
    %53 = vector.multi_reduction <add>, %52, %cst_18 [1] : vector<8x128xf32> to vector<8xf32>
    %54 = vector.shape_cast %53 : vector<8xf32> to vector<8x1xf32>
    %55 = arith.mulf %49, %49 : vector<8x1xf32>
    %cst_19 = arith.constant 9.600000e+01 : f32
    %56 = vector.broadcast %cst_19 : f32 to vector<8x1xf32>
    %57 = arith.mulf %56, %55 : vector<8x1xf32>
    %58 = arith.subf %54, %57 : vector<8x1xf32>
    %cst_20 = arith.constant 3.125000e-02 : f32
    %59 = vector.broadcast %cst_20 : f32 to vector<8x1xf32>
    %60 = arith.mulf %58, %59 : vector<8x1xf32>
    %cst_21 = arith.constant 0.000000e+00 : f32
    %61 = vector.broadcast %cst_21 : f32 to vector<8x1xf32>
    %62 = arith.maximumf %60, %61 : vector<8x1xf32>
    %cst_22 = arith.constant 9.99999974E-6 : f32
    %63 = vector.broadcast %cst_22 : f32 to vector<8x1xf32>
    %64 = arith.addf %62, %63 : vector<8x1xf32>
    %65 = math.rsqrt %64 : vector<8x1xf32>
    %66 = vector.broadcast %65 : vector<8x1xf32> to vector<8x128xf32>
    %67 = arith.mulf %51, %66 : vector<8x128xf32>
    %68 = vector.broadcast %5 : vector<1x128xf32> to vector<8x128xf32>
    %69 = arith.mulf %67, %68 : vector<8x128xf32>
    %70 = vector.broadcast %6 : vector<1x128xf32> to vector<8x128xf32>
    %71 = arith.addf %69, %70 : vector<8x128xf32>
    %c0_23 = arith.constant 0 : index
    %c0_24 = arith.constant 0 : index
    %72 = vector.load %arg1[%c0_23, %c0_24] : memref<8x128xf32, #tpu.memory_space<vmem>>, vector<8x128xf32>
    %73 = arith.addf %72, %71 : vector<8x128xf32>
    %c0_25 = arith.constant 0 : index
    %c0_26 = arith.constant 0 : index
    %74 = vector.load %arg5[%c0_25, %c0_26] : memref<8x128xf32, #tpu.memory_space<vmem>>, vector<8x128xf32>
    tpu.vector_store %arg5[%c0_25, %c0_26], %73 {strides = array<i32>} : memref<8x128xf32, #tpu.memory_space<vmem>>, vector<8x128xf32>,
    return
  }
  func.func @transform_0(%arg0: i32) -> (i32, i32) {
    %c0_i32 = arith.constant 0 : i32
    %c0_i32_0 = arith.constant 0 : i32
    return %arg0, %c0_i32 : i32, i32
  }
  func.func @transform_1(%arg0: i32) -> (i32, i32) {
    %c0_i32 = arith.constant 0 : i32
    %c0_i32_0 = arith.constant 0 : i32
    %c0_i32_1 = arith.constant 0 : i32
    return %c0_i32, %c0_i32_0 : i32, i32
  }
  func.func @transform_2(%arg0: i32) -> (i32, i32) {
    %c0_i32 = arith.constant 0 : i32
    %c0_i32_0 = arith.constant 0 : i32
    %c0_i32_1 = arith.constant 0 : i32
    return %c0_i32, %c0_i32_0 : i32, i32
  }
  func.func @transform_3(%arg0: i32) -> (i32, i32) {
    %c0_i32 = arith.constant 0 : i32
    %c0_i32_0 = arith.constant 0 : i32
    %c0_i32_1 = arith.constant 0 : i32
    return %c0_i32, %c0_i32_0 : i32, i32
  }
  func.func @transform_4(%arg0: i32) -> (i32, i32) {
    %c0_i32 = arith.constant 0 : i32
    %c0_i32_0 = arith.constant 0 : i32
    return %arg0, %c0_i32 : i32, i32
  }
}

</mosaic_0001>

<llo_original>
// kernel: tpu_custom_call.1
$region0: #{tpu_custom_call.1}
  #allocation0 [shape = 'u32[]', space=smem, size = 0x4, offset = 0x4, fixed_abs, tag = 'smem constant byte address 0x4 - core index']
  #allocation1 [shape = 'u32[144,128]{1,0:T(1,128)}', space=vmem, size = 0x12000, scoped, tag = 'internal scratch']
  %s0 = inlined_call_operand.hbm [shape: f32[16,128], index: 0, kind: input, shape index: {}]
  %s1 = inlined_call_operand.hbm [shape: bf16[128,128], index: 1, kind: input, shape index: {}]
  %s2 = inlined_call_operand.hbm [shape: bf16[128,128], index: 2, kind: input, shape index: {}]
  %s3 = inlined_call_operand.hbm [shape: f32[8,128], index: 3, kind: input, shape index: {}]
  %s4 = inlined_call_operand.hbm [shape: f32[16,128], index: 4, kind: output, shape index: {}]
  %s5 = sld [smem:[#allocation0]]
  $region65: #{tpu_custom_call.1} parent=0
    _
  %s7 = ssub.s32 1, %s5
  %s8 = scalar_select 0, %s7, %s5
  $region1: #{tpu_custom_call.1} parent=0
    #allocation2 [shape = 'u8[8192]{0}', space=vmem, size = 0x2000, scoped, tag = 'input window, operand 0']
    #allocation3 [shape = 's32[2]{0}', space=sflag, size = 0x8, scoped, tag = 'scoped memory for tpu_custom_call.1']
    #allocation4 [shape = 's32[2]{0}', space=sflag, size = 0x8, scoped, tag = 'scoped memory for tpu_custom_call.1']
    #allocation5 [shape = 'u8[32768]{0}', space=vmem, size = 0x8000, scoped, tag = 'input window, operand 1, single buffered']
    #allocation6 [shape = 's32[1]{0}', space=sflag, size = 0x4, scoped, tag = 'scoped memory for tpu_custom_call.1']
    #allocation7 [shape = 'u8[32768]{0}', space=vmem, size = 0x8000, scoped, tag = 'input window, operand 2, single buffered']
    #allocation8 [shape = 'u8[4096]{0}', space=vmem, size = 0x1000, scoped, tag = 'input window, operand 3, single buffered']
    #allocation9 [shape = 's32[1]{0}', space=sflag, size = 0x4, scoped, tag = 'scoped memory for tpu_custom_call.1']
    #allocation10 [shape = 'u8[8192]{0}', space=vmem, size = 0x2000, scoped, tag = 'output window, operand 0']
    %9 = vsyncpa [#allocation3], 0
    %s10 = scalar_lea.sflag [#allocation3], 1
    %11 = vsyncpa %s10, 0
    %12 = vsyncpa [#allocation6], 0
    %13 = vsyncpa [#allocation9], 0
    %14 = vsyncpa [#allocation4], 0
    %s15 = scalar_lea.sflag [#allocation4], 1
    %16 = vsyncpa %s15, 0
    loop: start=0, step=1, limit=4
    $region2: #{tpu_custom_call.1} parent=1 // loop_pre_header
      _
    $region3: #{tpu_custom_call.1} parent=1 // loop_header
      %s18 = sphi 0, %s22
      %p19 = scmp.ge.s32.totalorder %s18, 4
      %s28 = sphi 0, %s30
      %s31 = sphi 0, %s28
      %s32 = sphi 0, %s31
      %s48 = sphi 0, %s32
      %s52 = sphi 0, %s52
      %s54 = sphi 0, %s52
      %s55 = sphi 0, %s54
      %s69 = sphi 0, %s55
      %s73 = sphi 0, %s73
      %s75 = sphi 0, %s73
      %s76 = sphi 0, %s75
      %s90 = sphi 0, %s76
      %s94 = sphi 0, %s94
      %s96 = sphi 0, %s94
      %s97 = sphi 0, %s96
      %s111 = sphi 0, %s97
      %s117 = sphi 0, %s119
      %s120 = sphi 0, %s117
      %s121 = sphi 0, %s120
      %s137 = sphi 0, %s121
    $region4: #{tpu_custom_call.1} parent=1 // loop_header_branch
      %21 = sbr.rel (%p19) target = $region8
    $region5: #{tpu_custom_call.1} parent=1 // loop_body
      %s23 = ssub.s32 %s18, 1
      %s24 = ssub.s32 %s18, 2
      %s25 = sadd.s32 %s18, 1
      %s26 = ssub.s32 %s18, %s25
      %p27 = scmp.eq.s32.totalorder %s26, 0
      %s29 = sadd.s32 %s28, 1
      %s30 = scalar_select %p27, %s28, %s29
      %p33 = pneg %p27
      %p34 = scmp.eq.s32.totalorder %s18, 1
      %p35 = por %p33, %p34
      %p36 = scmp.ne.s32.totalorder %s28, %s31
      %p37 = scmp.eq.s32.totalorder %s18, 0
      %p38 = por %p36, %p37
      %p39 = scmp.ne.s32.totalorder %s28, %s31
      %p40 = scmp.eq.s32.totalorder %s23, 1
      %p41 = por %p39, %p40
      %p42 = scmp.ne.s32.totalorder %s31, %s32
      %p43 = scmp.eq.s32.totalorder %s23, 0
      %p44 = por %p42, %p43
      %p45 = scmp.ne.s32.totalorder %s31, %s32
      %p46 = scmp.eq.s32.totalorder %s24, 1
      %p47 = por %p45, %p46
      %p49 = scmp.ne.s32.totalorder %s32, %s48
      %p50 = scmp.eq.s32.totalorder %s24, 0
      %p51 = por %p49, %p50
      %s53 = sadd.s32 %s52, 1
      %p56 = scmp.eq.s32.totalorder %s18, 1
      %p57 = scmp.ne.s32.totalorder %s52, %s54
      %p58 = scmp.eq.s32.totalorder %s18, 0
      %p59 = por %p57, %p58
      %p60 = scmp.ne.s32.totalorder %s52, %s54
      %p61 = scmp.eq.s32.totalorder %s23, 1
      %p62 = por %p60, %p61
      %p63 = scmp.ne.s32.totalorder %s54, %s55
      %p64 = scmp.eq.s32.totalorder %s23, 0
      %p65 = por %p63, %p64
      %p66 = scmp.ne.s32.totalorder %s54, %s55
      %p67 = scmp.eq.s32.totalorder %s24, 1
      %p68 = por %p66, %p67
      %p70 = scmp.ne.s32.totalorder %s55, %s69
      %p71 = scmp.eq.s32.totalorder %s24, 0
      %p72 = por %p70, %p71
      %s74 = sadd.s32 %s73, 1
      %p77 = scmp.eq.s32.totalorder %s18, 1
      %p78 = scmp.ne.s32.totalorder %s73, %s75
      %p79 = scmp.eq.s32.totalorder %s18, 0
      %p80 = por %p78, %p79
      %p81 = scmp.ne.s32.totalorder %s73, %s75
      %p82 = scmp.eq.s32.totalorder %s23, 1
      %p83 = por %p81, %p82
      %p84 = scmp.ne.s32.totalorder %s75, %s76
      %p85 = scmp.eq.s32.totalorder %s23, 0
      %p86 = por %p84, %p85
      %p87 = scmp.ne.s32.totalorder %s75, %s76
      %p88 = scmp.eq.s32.totalorder %s24, 1
      %p89 = por %p87, %p88
      %p91 = scmp.ne.s32.totalorder %s76, %s90
      %p92 = scmp.eq.s32.totalorder %s24, 0
      %p93 = por %p91, %p92
      %s95 = sadd.s32 %s94, 1
      %p98 = scmp.eq.s32.totalorder %s18, 1
      %p99 = scmp.ne.s32.totalorder %s94, %s96
      %p100 = scmp.eq.s32.totalorder %s18, 0
      %p101 = por %p99, %p100
      %p102 = scmp.ne.s32.totalorder %s94, %s96
      %p103 = scmp.eq.s32.totalorder %s23, 1
      %p104 = por %p102, %p103
      %p105 = scmp.ne.s32.totalorder %s96, %s97
      %p106 = scmp.eq.s32.totalorder %s23, 0
      %p107 = por %p105, %p106
      %p108 = scmp.ne.s32.totalorder %s96, %s97
      %p109 = scmp.eq.s32.totalorder %s24, 1
      %p110 = por %p108, %p109
      %p112 = scmp.ne.s32.totalorder %s97, %s111
      %p113 = scmp.eq.s32.totalorder %s24, 0
      %p114 = por %p112, %p113
      %s115 = ssub.s32 %s18, %s25
      %p116 = scmp.eq.s32.totalorder %s115, 0
      %s118 = sadd.s32 %s117, 1
      %s119 = scalar_select %p116, %s117, %s118
      %p122 = pneg %p116
      %p123 = scmp.eq.s32.totalorder %s18, 1
      %p124 = por %p122, %p123
      %p125 = scmp.ne.s32.totalorder %s117, %s120
      %p126 = scmp.eq.s32.totalorder %s18, 0
      %p127 = por %p125, %p126
      %p128 = scmp.ne.s32.totalorder %s117, %s120
      %p129 = scmp.eq.s32.totalorder %s23, 1
      %p130 = por %p128, %p129
      %p131 = scmp.ne.s32.totalorder %s120, %s121
      %p132 = scmp.eq.s32.totalorder %s23, 0
      %p133 = por %p131, %p132
      %p134 = scmp.ne.s32.totalorder %s120, %s121
      %p135 = scmp.eq.s32.totalorder %s24, 1
      %p136 = por %p134, %p135
      %p138 = scmp.ne.s32.totalorder %s121, %s137
      %p139 = scmp.eq.s32.totalorder %s24, 0
      %p140 = por %p138, %p139
      %p141 = scmp.le.s32.totalorder 1, %s18
      %p142 = scmp.lt.s32.totalorder %s18, 3
      %p143 = pnand %p141, %p142
      %p144 = pneg %p143
      // Predicated region
      $region9: #{tpu_custom_call.1} parent=5 // pred_check
        _
      $region10: #{tpu_custom_call.1} parent=5 // pred_check_branch
        %146 = sbr.rel (%p143) target = $region12
      $region11: #{tpu_custom_call.1} parent=5 // pred_region
        %s147 = ssub.s32 %s18, 1
        // Predicated region
        $region13: #{tpu_custom_call.1} parent=11 // pred_check
          %p148 = pneg %p65
        $region14: #{tpu_custom_call.1} parent=11 // pred_check_branch
          %150 = sbr.rel (%p148) target = $region16
        $region15: #{tpu_custom_call.1} parent=11 // pred_region
          %s152 = ssub.s32 1024, 1024
          %153 = vsyncadd [#allocation6], %s152
          %s154 = sshll.u32 [#allocation5], 4
          %s155 = int_to_ptr.vmem [resolvable:$true] %s154
          %160 = dma.hbm_to_vmem [thread:$0]  %s1, 1024, %s155, [#allocation6], 64, 64, 4
        $region16: #{tpu_custom_call.1} parent=11 // pred_fallthru
          _
        // Predicated region
        $region17: #{tpu_custom_call.1} parent=11 // pred_check
          %p161 = pneg %p86
        $region18: #{tpu_custom_call.1} parent=11 // pred_check_branch
          %163 = sbr.rel (%p161) target = $region20
        $region19: #{tpu_custom_call.1} parent=11 // pred_region
          %s165 = ssub.s32 1024, 1024
          %166 = vsyncadd [#allocation6], %s165
          %s167 = sshll.u32 [#allocation7], 4
          %s168 = int_to_ptr.vmem [resolvable:$true] %s167
          %173 = dma.hbm_to_vmem [thread:$0]  %s2, 1024, %s168, [#allocation6], 64, 64, 4
        $region20: #{tpu_custom_call.1} parent=11 // pred_fallthru
          _
        // Predicated region
        $region21: #{tpu_custom_call.1} parent=11 // pred_check
          %p174 = pneg %p107
        $region22: #{tpu_custom_call.1} parent=11 // pred_check_branch
          %176 = sbr.rel (%p174) target = $region24
        $region23: #{tpu_custom_call.1} parent=11 // pred_region
          %s178 = ssub.s32 128, 128
          %179 = vsyncadd [#allocation9], %s178
          %s181 = sshll.u32 [#allocation8], 4
          %s182 = int_to_ptr.vmem [resolvable:$true] %s181
          %184 = dma.hbm_to_vmem [thread:$0]  %s3, 128, %s182, [#allocation9]
        $region24: #{tpu_custom_call.1} parent=11 // pred_fallthru
          _
      $region12: #{tpu_custom_call.1} parent=5 // pred_fallthru
        _
      %p185 = scmp.lt.s32.totalorder %s18, 2
      // Predicated region
      $region25: #{tpu_custom_call.1} parent=5 // pred_check
        %p186 = pneg %p185
      $region26: #{tpu_custom_call.1} parent=5 // pred_check_branch
        %188 = sbr.rel (%p186) target = $region28
      $region27: #{tpu_custom_call.1} parent=5 // pred_region
        // Predicated region
        $region29: #{tpu_custom_call.1} parent=27 // pred_check
          %p189 = pneg %p38
        $region30: #{tpu_custom_call.1} parent=27 // pred_check_branch
          %191 = sbr.rel (%p189) target = $region32
        $region31: #{tpu_custom_call.1} parent=27 // pred_region
          %s192 = sand.u32 %s28, 1
          %s193 = scalar_lea.sflag [#allocation3], %s192
          %s194 = sand.u32 %s28, 1
          %s195 = smul.addr %s194, 8
          %s196 = scalar_lea.vmem [#allocation2], %s195
          %s198 = ssub.s32 128, 128
          %199 = vsyncadd %s193, %s198
          %s200 = smul.addr %s18, 128
          %s201 = scalar_lea.hbm %s0, %s200
          %s203 = sshll.u32 %s196, 4
          %s204 = int_to_ptr.vmem [resolvable:$true] %s203
          %206 = dma.hbm_to_vmem [thread:$0]  %s201, 128, %s204, %s193
        $region32: #{tpu_custom_call.1} parent=27 // pred_fallthru
          _
      $region28: #{tpu_custom_call.1} parent=5 // pred_fallthru
        _
      %p207 = scmp.le.s32.totalorder 1, %s18
      %p208 = scmp.lt.s32.totalorder %s18, 3
      %p209 = pnand %p207, %p208
      %p210 = pneg %p209
      // Predicated region
      $region33: #{tpu_custom_call.1} parent=5 // pred_check
        _
      $region34: #{tpu_custom_call.1} parent=5 // pred_check_branch
        %212 = sbr.rel (%p209) target = $region36
      $region35: #{tpu_custom_call.1} parent=5 // pred_region
        %s213 = ssub.s32 %s18, 1
        %s214 = sand.u32 %s31, 1
        %s215 = scalar_lea.sflag [#allocation3], %s214
        %s216 = sand.u32 %s31, 1
        %s217 = smul.addr %s216, 8
        %s218 = scalar_lea.vmem [#allocation2], %s217
        // Predicated region
        $region37: #{tpu_custom_call.1} parent=35 // pred_check
          %p219 = pneg %p44
        $region38: #{tpu_custom_call.1} parent=35 // pred_check_branch
          %221 = sbr.rel (%p219) target = $region40
        $region39: #{tpu_custom_call.1} parent=35 // pred_region
          %222 = dma.done %s215, 128
        $region40: #{tpu_custom_call.1} parent=35 // pred_fallthru
          _
        // Predicated region
        $region41: #{tpu_custom_call.1} parent=35 // pred_check
          %p223 = pneg %p65
        $region42: #{tpu_custom_call.1} parent=35 // pred_check_branch
          %225 = sbr.rel (%p223) target = $region44
        $region43: #{tpu_custom_call.1} parent=35 // pred_region
          %226 = dma.done [#allocation6], 1024
        $region44: #{tpu_custom_call.1} parent=35 // pred_fallthru
          _
        // Predicated region
        $region45: #{tpu_custom_call.1} parent=35 // pred_check
          %p227 = pneg %p86
        $region46: #{tpu_custom_call.1} parent=35 // pred_check_branch
          %229 = sbr.rel (%p227) target = $region48
        $region47: #{tpu_custom_call.1} parent=35 // pred_region
          %230 = dma.done [#allocation6], 1024
        $region48: #{tpu_custom_call.1} parent=35 // pred_fallthru
          _
        // Predicated region
        $region49: #{tpu_custom_call.1} parent=35 // pred_check
          %p231 = pneg %p107
        $region50: #{tpu_custom_call.1} parent=35 // pred_check_branch
          %233 = sbr.rel (%p231) target = $region52
        $region51: #{tpu_custom_call.1} parent=35 // pred_region
          %234 = dma.done [#allocation9], 128
        $region52: #{tpu_custom_call.1} parent=35 // pred_fallthru
          _
        %s235 = sand.u32 %s31, 1
        %s236 = scalar_lea.sflag [#allocation3], %s235
        %s237 = sand.u32 %s31, 1
        %s238 = smul.addr %s237, 8
        %s239 = scalar_lea.vmem [#allocation2], %s238
        %p240 = pneg %p44
        %p241 = pneg %p41
        %p242 = pneg %p65
        %p243 = pneg %p62
        %p244 = pneg %p86
        %p245 = pneg %p83
        %p246 = pneg %p107
        %p247 = pneg %p104
        %p248 = pneg %p133
        %p249 = pneg %p130
        %s250 = sand.u32 %s120, 1
        %s251 = scalar_lea.sflag [#allocation4], %s250
        %s252 = sand.u32 %s120, 1
        %s253 = smul.addr %s252, 8
        %s254 = scalar_lea.vmem [#allocation10], %s253
        %v256 = vld [vmem:[#allocation8] sm:$0xff]
        %v257 = vld [vmem:[%s218] sm:$0xff]
        %v258 = vpack.c.bf16 %v257, %v257
        %v259 = vld [vmem:[#allocation5] sm:$0xf]
        %v260 = vld [vmem:[#allocation5 + $0x4] sm:$0xf]
        %v261 = vld [vmem:[#allocation5 + $0x8] sm:$0xf]
        %v262 = vld [vmem:[#allocation5 + $0xc] sm:$0xf]
        %v263 = vld [vmem:[#allocation5 + $0x10] sm:$0xf]
        %v264 = vld [vmem:[#allocation5 + $0x14] sm:$0xf]
        %v265 = vld [vmem:[#allocation5 + $0x18] sm:$0xf]
        %v266 = vld [vmem:[#allocation5 + $0x1c] sm:$0xf]
        %v267 = vld [vmem:[#allocation5 + $0x20] sm:$0xf]
        %v268 = vld [vmem:[#allocation5 + $0x24] sm:$0xf]
        %v269 = vld [vmem:[#allocation5 + $0x28] sm:$0xf]
        %v270 = vld [vmem:[#allocation5 + $0x2c] sm:$0xf]
        %v271 = vld [vmem:[#allocation5 + $0x30] sm:$0xf]
        %v272 = vld [vmem:[#allocation5 + $0x34] sm:$0xf]
        %v273 = vld [vmem:[#allocation5 + $0x38] sm:$0xf]
        %v274 = vld [vmem:[#allocation5 + $0x3c] sm:$0xf]
        %v275 = vlaneseq
        %v276 = vshrl.u32 %v275, 7
        %v277 = vsub.s32 0, %v276
        %v278 = vrot.slane %v256, %v277
        %v295 = vunpack.c.l.b16 %v259
        %v296 = vunpack.c.l.b16 %v260
        %v297 = vunpack.c.l.b16 %v261
        %v298 = vunpack.c.l.b16 %v262
        %v299 = vunpack.c.l.b16 %v263
        %v300 = vunpack.c.l.b16 %v264
        %v301 = vunpack.c.l.b16 %v265
        %v302 = vunpack.c.l.b16 %v266
        %v303 = vunpack.c.l.b16 %v267
        %v304 = vunpack.c.l.b16 %v268
        %v305 = vunpack.c.l.b16 %v269
        %v306 = vunpack.c.l.b16 %v270
        %v307 = vunpack.c.l.b16 %v271
        %v308 = vunpack.c.l.b16 %v272
        %v309 = vunpack.c.l.b16 %v273
        %v310 = vunpack.c.l.b16 %v274
        %v311 = vpack.c.b16 %v296, %v295
        %v312 = vpack.c.b16 %v298, %v297
        %v313 = vpack.c.b16 %v300, %v299
        %v314 = vpack.c.b16 %v302, %v301
        %v315 = vpack.c.b16 %v304, %v303
        %v316 = vpack.c.b16 %v306, %v305
        %v317 = vpack.c.b16 %v308, %v307
        %v318 = vpack.c.b16 %v310, %v309
        %327 = vmatprep.subr.bf16.mxu0 0
        %328 = vmatpush1.bf16.msra.mxu0 %v318
        %329 = vmatprep.subr.bf16.mxu0 0
        %330 = vmatpush1.bf16.msra.mxu0 %v317
        %331 = vmatprep.subr.bf16.mxu0 0
        %332 = vmatpush1.bf16.msra.mxu0 %v316
        %333 = vmatprep.subr.bf16.mxu0 0
        %334 = vmatpush1.bf16.msra.mxu0 %v315
        %335 = vmatprep.subr.bf16.mxu0 0
        %336 = vmatpush1.bf16.msra.mxu0 %v314
        %337 = vmatprep.subr.bf16.mxu0 0
        %338 = vmatpush1.bf16.msra.mxu0 %v313
        %339 = vmatprep.subr.bf16.mxu0 0
        %340 = vmatpush1.bf16.msra.mxu0 %v312
        %341 = vmatprep.subr.bf16.mxu0 0
        %342 = vmatpush1.bf16.msra.mxu0 %v311
        %343 = vmatprep.subr.bf16.mxu0 0
        %344 = vmatpush2.bf16.msra.mxu0 0
        %345 = vmatprep.subr.bf16.mxu0 0
        %346 = vmatpush2.bf16.msra.mxu0 0
        %347 = vmatprep.subr.bf16.mxu0 0
        %348 = vmatpush2.bf16.msra.mxu0 0
        %349 = vmatprep.subr.bf16.mxu0 0
        %350 = vmatpush2.bf16.msra.mxu0 0
        %351 = vmatprep.subr.bf16.mxu0 0
        %352 = vmatpush2.bf16.msra.mxu0 0
        %353 = vmatprep.subr.bf16.mxu0 0
        %354 = vmatpush2.bf16.msra.mxu0 0
        %355 = vmatprep.subr.bf16.mxu0 0
        %356 = vmatpush2.bf16.msra.mxu0 0
        %357 = vmatprep.subr.bf16.mxu0 0
        %358 = vmatpush2.bf16.msra.mxu0 0
        %359 = vmatprep.mubr.bf16.mxu0 0
        %360 = vmatmul.mubr.bf16.gmra.mxu0 %v258
        %v361 = vpop.f32.mrf.mxu0
        %v362 = vadd.f32 %v278, %v361
        %v363 = vpop.f32.mrf.mxu0
        %v364 = vpop.f32.mrf.mxu0
        %v365 = vpop.f32.mrf.mxu0
        %366 = vdwg.mxu0
        %367 = vadd.xlane.f32.xlu0 %v362
        %v368 = vpop.xlane.xlu0 %367
        %v369 = vmul.f32 %v368, 0.03125
        %v370 = vsub.f32 %v362, %v369
        %v371 = vmul.f32 %v370, %v370
        %372 = vadd.xlane.f32.xlu0 %v371
        %v373 = vpop.xlane.xlu0 %372
        %v374 = vmul.f32 %v369, %v369
        %v375 = vmul.f32 %v374, 96.0
        %v376 = vsub.f32 %v373, %v375
        %v377 = vmul.f32 %v376, 0.03125
        %v378 = vmax.f32 %v377, 0.0
        %v379 = vadd.f32 %v378, 1e-05
        %v380 = vrsqrt.pop %v379
        %v381 = vmul.f32 %v370, %v380
        %v382 = vlaneseq
        %v383 = vshrl.u32 %v382, 7
        %v384 = vsub.s32 1, %v383
        %v385 = vrot.slane %v256, %v384
        %v386 = vmul.f32 %v381, %v385
        %v387 = vlaneseq
        %v388 = vshrl.u32 %v387, 7
        %v389 = vsub.s32 2, %v388
        %v390 = vrot.slane %v256, %v389
        %v391 = vadd.f32 %v386, %v390
        %v392 = vmax.f32 %v391, 0.0
        %v393 = vpack.c.bf16 %v392, %v392
        %v394 = vld [vmem:[#allocation7] sm:$0xf]
        %v395 = vld [vmem:[#allocation7 + $0x4] sm:$0xf]
        %v396 = vld [vmem:[#allocation7 + $0x8] sm:$0xf]
        %v397 = vld [vmem:[#allocation7 + $0xc] sm:$0xf]
        %v398 = vld [vmem:[#allocation7 + $0x10] sm:$0xf]
        %v399 = vld [vmem:[#allocation7 + $0x14] sm:$0xf]
        %v400 = vld [vmem:[#allocation7 + $0x18] sm:$0xf]
        %v401 = vld [vmem:[#allocation7 + $0x1c] sm:$0xf]
        %v402 = vld [vmem:[#allocation7 + $0x20] sm:$0xf]
        %v403 = vld [vmem:[#allocation7 + $0x24] sm:$0xf]
        %v404 = vld [vmem:[#allocation7 + $0x28] sm:$0xf]
        %v405 = vld [vmem:[#allocation7 + $0x2c] sm:$0xf]
        %v406 = vld [vmem:[#allocation7 + $0x30] sm:$0xf]
        %v407 = vld [vmem:[#allocation7 + $0x34] sm:$0xf]
        %v408 = vld [vmem:[#allocation7 + $0x38] sm:$0xf]
        %v409 = vld [vmem:[#allocation7 + $0x3c] sm:$0xf]
        %v410 = vlaneseq
        %v411 = vshrl.u32 %v410, 7
        %v412 = vsub.s32 3, %v411
        %v413 = vrot.slane %v256, %v412
        %v430 = vunpack.c.l.b16 %v394
        %v431 = vunpack.c.l.b16 %v395
        %v432 = vunpack.c.l.b16 %v396
        %v433 = vunpack.c.l.b16 %v397
        %v434 = vunpack.c.l.b16 %v398
        %v435 = vunpack.c.l.b16 %v399
        %v436 = vunpack.c.l.b16 %v400
        %v437 = vunpack.c.l.b16 %v401
        %v438 = vunpack.c.l.b16 %v402
        %v439 = vunpack.c.l.b16 %v403
        %v440 = vunpack.c.l.b16 %v404
        %v441 = vunpack.c.l.b16 %v405
        %v442 = vunpack.c.l.b16 %v406
        %v443 = vunpack.c.l.b16 %v407
        %v444 = vunpack.c.l.b16 %v408
        %v445 = vunpack.c.l.b16 %v409
        %v446 = vpack.c.b16 %v431, %v430
        %v447 = vpack.c.b16 %v433, %v432
        %v448 = vpack.c.b16 %v435, %v434
        %v449 = vpack.c.b16 %v437, %v436
        %v450 = vpack.c.b16 %v439, %v438
        %v451 = vpack.c.b16 %v441, %v440
        %v452 = vpack.c.b16 %v443, %v442
        %v453 = vpack.c.b16 %v445, %v444
        %462 = vmatprep.subr.bf16.mxu0 0
        %463 = vmatpush1.bf16.msra.mxu0 %v453
        %464 = vmatprep.subr.bf16.mxu0 0
        %465 = vmatpush1.bf16.msra.mxu0 %v452
        %466 = vmatprep.subr.bf16.mxu0 0
        %467 = vmatpush1.bf16.msra.mxu0 %v451
        %468 = vmatprep.subr.bf16.mxu0 0
        %469 = vmatpush1.bf16.msra.mxu0 %v450
        %470 = vmatprep.subr.bf16.mxu0 0
        %471 = vmatpush1.bf16.msra.mxu0 %v449
        %472 = vmatprep.subr.bf16.mxu0 0
        %473 = vmatpush1.bf16.msra.mxu0 %v448
        %474 = vmatprep.subr.bf16.mxu0 0
        %475 = vmatpush1.bf16.msra.mxu0 %v447
        %476 = vmatprep.subr.bf16.mxu0 0
        %477 = vmatpush1.bf16.msra.mxu0 %v446
        %478 = vmatprep.subr.bf16.mxu0 0
        %479 = vmatpush2.bf16.msra.mxu0 0
        %480 = vmatprep.subr.bf16.mxu0 0
        %481 = vmatpush2.bf16.msra.mxu0 0
        %482 = vmatprep.subr.bf16.mxu0 0
        %483 = vmatpush2.bf16.msra.mxu0 0
        %484 = vmatprep.subr.bf16.mxu0 0
        %485 = vmatpush2.bf16.msra.mxu0 0
        %486 = vmatprep.subr.bf16.mxu0 0
        %487 = vmatpush2.bf16.msra.mxu0 0
        %488 = vmatprep.subr.bf16.mxu0 0
        %489 = vmatpush2.bf16.msra.mxu0 0
        %490 = vmatprep.subr.bf16.mxu0 0
        %491 = vmatpush2.bf16.msra.mxu0 0
        %492 = vmatprep.subr.bf16.mxu0 0
        %493 = vmatpush2.bf16.msra.mxu0 0
        %494 = vmatprep.mubr.bf16.mxu0 0
        %495 = vmatmul.mubr.bf16.gmra.mxu0 %v393
        %v496 = vpop.f32.mrf.mxu0
        %v497 = vadd.f32 %v413, %v496
        %v498 = vpop.f32.mrf.mxu0
        %v499 = vpop.f32.mrf.mxu0
        %v500 = vpop.f32.mrf.mxu0
        %501 = vdwg.mxu0
        %502 = vadd.xlane.f32.xlu0 %v497
        %v503 = vpop.xlane.xlu0 %502
        %v504 = vmul.f32 %v503, 0.03125
        %v505 = vsub.f32 %v497, %v504
        %v506 = vmul.f32 %v505, %v505
        %507 = vadd.xlane.f32.xlu0 %v506
        %v508 = vpop.xlane.xlu0 %507
        %v509 = vmul.f32 %v504, %v504
        %v510 = vmul.f32 %v509, 96.0
        %v511 = vsub.f32 %v508, %v510
        %v512 = vmul.f32 %v511, 0.03125
        %v513 = vmax.f32 %v512, 0.0
        %v514 = vadd.f32 %v513, 1e-05
        %v515 = vrsqrt.pop %v514
        %v516 = vmul.f32 %v505, %v515
        %v517 = vlaneseq
        %v518 = vshrl.u32 %v517, 7
        %v519 = vsub.s32 4, %v518
        %v520 = vrot.slane %v256, %v519
        %v521 = vmul.f32 %v516, %v520
        %v522 = vlaneseq
        %v523 = vshrl.u32 %v522, 7
        %v524 = vsub.s32 5, %v523
        %v525 = vrot.slane %v256, %v524
        %v526 = vadd.f32 %v521, %v525
        %v527 = vadd.f32 %v257, %v526
        %528 = vst [vmem:[%s254] sm:$0xff] %v527
        %s529 = sand.u32 %s120, 1
        %s530 = scalar_lea.sflag [#allocation4], %s529
        %s531 = sand.u32 %s120, 1
        %s532 = smul.addr %s531, 8
        %s533 = scalar_lea.vmem [#allocation10], %s532
        // Predicated region
        $region53: #{tpu_custom_call.1} parent=35 // pred_check
          %p534 = pneg %p130
        $region54: #{tpu_custom_call.1} parent=35 // pred_check_branch
          %536 = sbr.rel (%p534) target = $region56
        $region55: #{tpu_custom_call.1} parent=35 // pred_region
          %s538 = ssub.s32 128, 128
          %539 = vsyncadd %s530, %s538
          %s540 = smul.addr %s23, 128
          %s541 = scalar_lea.hbm %s4, %s540
          %s543 = sshll.u32 %s533, 4
          %s544 = int_to_ptr.vmem [resolvable:$true] %s543
          %546 = dma.vmem_to_hbm [thread:$0]  %s544, 128, %s541, %s530
        $region56: #{tpu_custom_call.1} parent=35 // pred_fallthru
          _
      $region36: #{tpu_custom_call.1} parent=5 // pred_fallthru
        _
      %p547 = scmp.le.s32.totalorder 2, %s18
      // Predicated region
      $region57: #{tpu_custom_call.1} parent=5 // pred_check
        %p548 = pneg %p547
      $region58: #{tpu_custom_call.1} parent=5 // pred_check_branch
        %550 = sbr.rel (%p548) target = $region60
      $region59: #{tpu_custom_call.1} parent=5 // pred_region
        %s551 = ssub.s32 %s18, 2
        // Predicated region
        $region61: #{tpu_custom_call.1} parent=59 // pred_check
          %p552 = pneg %p136
        $region62: #{tpu_custom_call.1} parent=59 // pred_check_branch
          %554 = sbr.rel (%p552) target = $region64
        $region63: #{tpu_custom_call.1} parent=59 // pred_region
          %s555 = sand.u32 %s121, 1
          %s556 = scalar_lea.sflag [#allocation4], %s555
          %s557 = sand.u32 %s121, 1
          %s558 = smul.addr %s557, 8
          %s559 = scalar_lea.vmem [#allocation10], %s558
          %560 = dma.done %s556, 128
        $region64: #{tpu_custom_call.1} parent=59 // pred_fallthru
          _
      $region60: #{tpu_custom_call.1} parent=5 // pred_fallthru
        _
    $region6: #{tpu_custom_call.1} parent=1 // loop_footer
      %s22 = sadd.s32 1, %s18
    $region7: #{tpu_custom_call.1} parent=1 // loop_footer_branch
      %17 = sbr.rel target = $region3
    $region8: #{tpu_custom_call.1} parent=1 // loop_exit
      _
    %561 = vsyncpa [#allocation3], 1
    %s562 = scalar_lea.sflag [#allocation3], 1
    %563 = vsyncpa %s562, 1
    %564 = vsyncpa [#allocation6], 1
    %565 = vsyncpa [#allocation9], 1
    %566 = vsyncpa [#allocation4], 1
    %s567 = scalar_lea.sflag [#allocation4], 1
    %568 = vsyncpa %s567, 1

</llo_original>
